<compile_context>
chip_gen: v6e
topology: v6e:2x2x1
jax: 0.10.0
libtpu: 0.0.40
codegen_flags: <defaults>
</compile_context>

<pallas_src>
import jax
import jax.numpy as jnp
from jax.experimental import pallas as pl
from jax.experimental.pallas import tpu as pltpu


def _round_up(n, m):
    return ((n + m - 1) // m) * m


def _make_fcv_kernel(n_chunks, chunk):
    """Kernel specialized on the (static) number of lane-chunks per batch tile."""

    def kernel(x_ref, w0_ref, b0_ref, w1_ref, b1_ref, w2_ref, b2_ref, o_ref):
        # x_ref : (tile_b, in_dim) f32        o_ref : (n_chunks, 1, chunk) f32
        # w0_ref: (H, in_dim) bf16            b0_ref/b1_ref: (H, 1) f32
        # w1_ref: (H, H) bf16                 w2_ref: (H, 1) f32
        # b2_ref: (1, 1) f32 in SMEM
        w0 = w0_ref[...]
        b0 = b0_ref[...]
        w1 = w1_ref[...]
        b1 = b1_ref[...]
        w2 = w2_ref[...]
        b2 = b2_ref[0, 0]

        def value_of(x_chunk):
            # x_chunk: (chunk, in_dim) f32  ->  state values (1, chunk) f32
            xc = x_chunk.astype(jnp.bfloat16)
            # layer 0: (H, in) contracted with (chunk, in) over in_dim -> (H, chunk) on MXU
            h0 = jax.lax.dot_general(
                w0, xc, (((1,), (1,)), ((), ())),
                preferred_element_type=jnp.float32)
            h0 = jnp.maximum(h0 + b0, 0.0)
            # layer 1: (H, H) @ (H, chunk) -> (H, chunk) on MXU
            h1 = jnp.dot(w1, h0.astype(jnp.bfloat16),
                         preferred_element_type=jnp.float32)
            h1 = jnp.maximum(h1 + b1, 0.0)
            # value head 64 -> 1: VPU multiply + XLU sublane reduce (MXU stays free)
            return jnp.sum(h1 * w2, axis=0, keepdims=True) + b2   # (1, chunk)

        if n_chunks == 1:
            # whole tile in one shot (small-batch / single-chunk path, fully static)
            o_ref[0] = value_of(x_ref[...]).astype(o_ref.dtype)
        else:
            # unrolled lane-chunk loop bounds vreg pressure (~32 live vregs/chunk)
            def body(c, carry):
                start = pl.multiple_of(c * chunk, chunk)
                v = value_of(x_ref[pl.ds(start, chunk), :])
                o_ref[c] = v.astype(o_ref.dtype)
                return carry

            jax.lax.fori_loop(0, n_chunks, body, 0, unroll=True)

    return kernel


def fcv_forward(x, params, *, tile_b=2048, chunk=256):
    """x: (B, in_dim) float32. Returns (B, 1) float32 state values.

    tile_b=2048 / chunk=256 are good defaults on v5e/v6e/v7x alike (the kernel
    is HBM/step-overhead bound; big tiles amortize per-step overhead while the
    inner chunk loop keeps register pressure bounded).
    """
    w0, b0, w1, b1, w2, b2 = (params["w0"], params["b0"], params["w1"],
                              params["b1"], params["w2"], params["b2"])
    B, in_dim = x.shape
    H = w0.shape[0]

    if B <= chunk:
        # Whole batch fits in one lane-chunk: single grid step, fully static kernel,
        # block shapes equal the array (no OOB anywhere).
        chunk = B
        tile_b = B
    else:
        tile_b = max(chunk, (tile_b // chunk) * chunk)        # multiple of chunk
        tile_b = min(
            tile_b,
            (B // chunk) * chunk,                             # blocks never exceed the array
            _round_up(pl.cdiv(B, 2), chunk),                  # keep >= 2 grid steps (v7x megacore)
        )
    num_tiles = pl.cdiv(B, tile_b)
    n_chunks = tile_b // chunk

    # Weights are tiny and VMEM-resident across all grid steps; feed them bf16.
    w0_bf = w0.astype(jnp.bfloat16)
    w1_bf = w1.astype(jnp.bfloat16)

    def const(shape):
        return pl.BlockSpec(shape, lambda i: (0, 0))

    kernel = _make_fcv_kernel(n_chunks, chunk)

    flops = 2 * B * (in_dim * H + H * H + H)
    bytes_accessed = (B * (in_dim * 4 + 4)                  # x in (f32) + values out (f32)
                      + (in_dim * H + H * H) * 2            # bf16 weights
                      + (3 * H + 1) * 4)                    # biases + value-head weight

    out = pl.pallas_call(
        kernel,
        out_shape=jax.ShapeDtypeStruct((num_tiles * n_chunks, 1, chunk), jnp.float32),
        grid=(num_tiles,),
        in_specs=[
            pl.BlockSpec((tile_b, in_dim), lambda i: (i, 0)),    # raw f32 x tiles (contiguous rows)
            const((H, in_dim)),                                  # w0 (bf16), resident
            const((H, 1)),                                       # b0
            const((H, H)),                                       # w1 (bf16), resident
            const((H, 1)),                                       # b1
            const((H, 1)),                                       # w2 (value head)
            pl.BlockSpec(memory_space=pltpu.MemorySpace.SMEM),   # b2 scalar
        ],
        out_specs=pl.BlockSpec((n_chunks, 1, chunk), lambda i: (i, 0, 0)),
        compiler_params=pltpu.CompilerParams(
            dimension_semantics=("parallel",)),                  # megacore sharding on v7x
        cost_estimate=pl.CostEstimate(
            flops=flops, transcendentals=0, bytes_accessed=bytes_accessed),
    )(x, w0_bf, b0, w1_bf, b1, w2, b2)

    # (num_tiles*n_chunks, 1, chunk) flattens to batch order; drop padded tail lanes.
    return out.reshape(-1)[:B].reshape(B, 1)


def init_params(key, input_dim, hidden_dims):
    """torch.nn.Linear-style init (uniform +- 1/sqrt(fan_in)).
    Weights kept in PyTorch (out, in) layout; w2 stored as (H, 1), biases as columns."""
    ks = jax.random.split(key, 6)

    def lin(kw, kb, fan_in, fan_out):
        bound = 1.0 / jnp.sqrt(fan_in)
        w = jax.random.uniform(kw, (fan_out, fan_in), jnp.float32, -bound, bound)
        b = jax.random.uniform(kb, (fan_out, 1), jnp.float32, -bound, bound)
        return w, b

    w0, b0 = lin(ks[0], ks[1], input_dim, hidden_dims)
    w1, b1 = lin(ks[2], ks[3], hidden_dims, hidden_dims)
    w2, b2 = lin(ks[4], ks[5], hidden_dims, 1)          # w2: (1, H), b2: (1, 1)
    return {"w0": w0, "b0": b0, "w1": w1, "b1": b1,
            "w2": w2.T, "b2": b2}                        # store w2 as (H, 1)


def fcv_reference(x, p):
    """Pure-JAX reference matching the kernel's precision path
    (bf16 matmul inputs, f32 accumulation)."""
    xb = x.astype(jnp.bfloat16)
    w0b = p["w0"].astype(jnp.bfloat16)
    w1b = p["w1"].astype(jnp.bfloat16)
    h0 = jnp.maximum(
        jnp.dot(xb, w0b.T, preferred_element_type=jnp.float32) + p["b0"].T, 0.0)
    h1 = jnp.maximum(
        jnp.dot(h0.astype(jnp.bfloat16), w1b.T, preferred_element_type=jnp.float32)
        + p["b1"].T, 0.0)
    return jnp.dot(h1, p["w2"], preferred_element_type=jnp.float32) + p["b2"]


if __name__ == "__main__":
    key = jax.random.PRNGKey(0)
    k_param, k_x1, k_x2 = jax.random.split(key, 3)

    input_dim = 16      # number of pressure sensors
    hidden_dims = 64

    params = init_params(k_param, input_dim, hidden_dims)

    # 1) Small batch: single-tile, fully static kernel path.
    x_small = jax.random.normal(k_x1, (8, input_dim), jnp.float32)
    out_small = jax.block_until_ready(fcv_forward(x_small, params))
    ref_small = fcv_reference(x_small, params)
    assert out_small.shape == (8, 1)
    err_s = jnp.max(jnp.abs(out_small - ref_small))
    assert jnp.allclose(out_small, ref_small, atol=1e-3, rtol=1e-3), f"max abs err {err_s}"

    # 2) Larger batch: multi-tile grid + in-kernel lane-chunk loop + OOB tail tile.
    x_big = jax.random.normal(k_x2, (600, input_dim), jnp.float32)
    out_big = jax.block_until_ready(fcv_forward(x_big, params, tile_b=512, chunk=128))
    ref_big = fcv_reference(x_big, params)
    assert out_big.shape == (600, 1)
    err_b = jnp.max(jnp.abs(out_big - ref_big))
    assert jnp.allclose(out_big, ref_big, atol=1e-3, rtol=1e-3), f"max abs err {err_b}"

    print("KERNEL_OK")
</pallas_src>

<mosaic_0001>
module attributes {stable_mosaic.version = 11 : i64} {
  func.func @kernel(%arg0: i32, %arg1: memref<8x16xf32, #tpu.memory_space<vmem>>, %arg2: memref<64x16xbf16, #tpu.memory_space<vmem>>, %arg3: memref<64x1xf32, #tpu.memory_space<vmem>>, %arg4: memref<64x64xbf16, #tpu.memory_space<vmem>>, %arg5: memref<64x1xf32, #tpu.memory_space<vmem>>, %arg6: memref<64x1xf32, #tpu.memory_space<vmem>>, %arg7: memref<1x1xf32, #tpu.memory_space<smem>>, %arg8: memref<1x1x8xf32, #tpu.memory_space<vmem>>) attributes {dimension_semantics = [#tpu.dimension_semantics<parallel>], iteration_bounds = array<i64: 1>, scalar_prefetch = 0 : i64, scratch_operands = 0 : i64, tpu.core_type = #tpu.core_type<tc>, window_params = [{transform_indices = @transform_0, window_bounds = array<i64: 8, 16>}, {pipeline_mode = #tpu.pipeline_mode<synchronous>, transform_indices = @transform_1, window_bounds = array<i64: 64, 16>}, {pipeline_mode = #tpu.pipeline_mode<synchronous>, transform_indices = @transform_2, window_bounds = array<i64: 64, 1>}, {pipeline_mode = #tpu.pipeline_mode<synchronous>, transform_indices = @transform_3, window_bounds = array<i64: 64, 64>}, {pipeline_mode = #tpu.pipeline_mode<synchronous>, transform_indices = @transform_4, window_bounds = array<i64: 64, 1>}, {pipeline_mode = #tpu.pipeline_mode<synchronous>, transform_indices = @transform_5, window_bounds = array<i64: 64, 1>}, {transform_indices = @transform_6, window_bounds = array<i64: 1, 1>}, {transform_indices = @transform_7, window_bounds = array<i64: 1, 1, 8>}]} {
    %c0 = arith.constant 0 : index
    %c0_0 = arith.constant 0 : index
    %0 = vector.load %arg2[%c0, %c0_0] : memref<64x16xbf16, #tpu.memory_space<vmem>>, vector<64x16xbf16>
    %c0_1 = arith.constant 0 : index
    %c0_2 = arith.constant 0 : index
    %1 = vector.load %arg3[%c0_1, %c0_2] : memref<64x1xf32, #tpu.memory_space<vmem>>, vector<64x1xf32>
    %c0_3 = arith.constant 0 : index
    %c0_4 = arith.constant 0 : index
    %2 = vector.load %arg4[%c0_3, %c0_4] : memref<64x64xbf16, #tpu.memory_space<vmem>>, vector<64x64xbf16>
    %c0_5 = arith.constant 0 : index
    %c0_6 = arith.constant 0 : index
    %3 = vector.load %arg5[%c0_5, %c0_6] : memref<64x1xf32, #tpu.memory_space<vmem>>, vector<64x1xf32>
    %c0_7 = arith.constant 0 : index
    %c0_8 = arith.constant 0 : index
    %4 = vector.load %arg6[%c0_7, %c0_8] : memref<64x1xf32, #tpu.memory_space<vmem>>, vector<64x1xf32>
    %c0_9 = arith.constant 0 : index
    %c0_10 = arith.constant 0 : index
    %5 = memref.load %arg7[%c0_9, %c0_10] : memref<1x1xf32, #tpu.memory_space<smem>>
    %c0_11 = arith.constant 0 : index
    %c0_12 = arith.constant 0 : index
    %6 = vector.load %arg1[%c0_11, %c0_12] : memref<8x16xf32, #tpu.memory_space<vmem>>, vector<8x16xf32>
    %7 = arith.truncf %6 : vector<8x16xf32> to vector<8x16xbf16>
    %cst = arith.constant dense<0.000000e+00> : vector<64x8xf32>
    %8 = tpu.matmul %0, %7, %cst {dimension_numbers = #tpu.dot_dimension_numbers<[1], [1], [0], [0], [0, 0, 1, 0], [], []>} : vector<64x16xbf16>, vector<8x16xbf16>, vector<64x8xf32> -> vector<64x8xf32>
    %9 = vector.broadcast %1 : vector<64x1xf32> to vector<64x8xf32>
    %10 = arith.addf %8, %9 : vector<64x8xf32>
    %cst_13 = arith.constant 0.000000e+00 : f32
    %11 = vector.broadcast %cst_13 : f32 to vector<64x8xf32>
    %12 = arith.maximumf %10, %11 : vector<64x8xf32>
    %13 = arith.truncf %12 : vector<64x8xf32> to vector<64x8xbf16>
    %cst_14 = arith.constant dense<0.000000e+00> : vector<64x8xf32>
    %14 = tpu.matmul %2, %13, %cst_14 {dimension_numbers = #tpu.dot_dimension_numbers<[1], [0], [0], [1], [0, 0, 1, 1], [], []>} : vector<64x64xbf16>, vector<64x8xbf16>, vector<64x8xf32> -> vector<64x8xf32>
    %15 = vector.broadcast %3 : vector<64x1xf32> to vector<64x8xf32>
    %16 = arith.addf %14, %15 : vector<64x8xf32>
    %cst_15 = arith.constant 0.000000e+00 : f32
    %17 = vector.broadcast %cst_15 : f32 to vector<64x8xf32>
    %18 = arith.maximumf %16, %17 : vector<64x8xf32>
    %19 = vector.broadcast %4 : vector<64x1xf32> to vector<64x8xf32>
    %20 = arith.mulf %18, %19 : vector<64x8xf32>
    %cst_16 = arith.constant dense<0.000000e+00> : vector<8xf32>
    %21 = vector.multi_reduction <add>, %20, %cst_16 [0] : vector<64x8xf32> to vector<8xf32>
    %22 = vector.shape_cast %21 : vector<8xf32> to vector<1x8xf32>
    %23 = vector.broadcast %5 : f32 to vector<1x8xf32>
    %24 = arith.addf %22, %23 : vector<1x8xf32>
    %c0_17 = arith.constant 0 : index
    %c0_18 = arith.constant 0 : index
    %c0_19 = arith.constant 0 : index
    %25 = vector.load %arg8[%c0_17, %c0_18, %c0_19] : memref<1x1x8xf32, #tpu.memory_space<vmem>>, vector<1x1x8xf32>
    %26 = vector.shape_cast %25 : vector<1x1x8xf32> to vector<1x8xf32>
    %27 = vector.shape_cast %24 : vector<1x8xf32> to vector<1x1x8xf32>
    tpu.vector_store %arg8[%c0_17, %c0_18, %c0_19], %27 {strides = array<i32>} : memref<1x1x8xf32, #tpu.memory_space<vmem>>, vector<1x1x8xf32>,
    return
  }
  func.func @transform_0(%arg0: i32) -> (i32, i32) {
    %c0_i32 = arith.constant 0 : i32
    %c0_i32_0 = arith.constant 0 : i32
    return %arg0, %c0_i32 : i32, i32
  }
  func.func @transform_1(%arg0: i32) -> (i32, i32) {
    %c0_i32 = arith.constant 0 : i32
    %c0_i32_0 = arith.constant 0 : i32
    %c0_i32_1 = arith.constant 0 : i32
    return %c0_i32, %c0_i32_0 : i32, i32
  }
  func.func @transform_2(%arg0: i32) -> (i32, i32) {
    %c0_i32 = arith.constant 0 : i32
    %c0_i32_0 = arith.constant 0 : i32
    %c0_i32_1 = arith.constant 0 : i32
    return %c0_i32, %c0_i32_0 : i32, i32
  }
  func.func @transform_3(%arg0: i32) -> (i32, i32) {
    %c0_i32 = arith.constant 0 : i32
    %c0_i32_0 = arith.constant 0 : i32
    %c0_i32_1 = arith.constant 0 : i32
    return %c0_i32, %c0_i32_0 : i32, i32
  }
  func.func @transform_4(%arg0: i32) -> (i32, i32) {
    %c0_i32 = arith.constant 0 : i32
    %c0_i32_0 = arith.constant 0 : i32
    %c0_i32_1 = arith.constant 0 : i32
    return %c0_i32, %c0_i32_0 : i32, i32
  }
  func.func @transform_5(%arg0: i32) -> (i32, i32) {
    %c0_i32 = arith.constant 0 : i32
    %c0_i32_0 = arith.constant 0 : i32
    %c0_i32_1 = arith.constant 0 : i32
    return %c0_i32, %c0_i32_0 : i32, i32
  }
  func.func @transform_6(%arg0: i32) -> (i32, i32) {
    %c0_i32 = arith.constant 0 : i32
    %c0_i32_0 = arith.constant 0 : i32
    %c0_i32_1 = arith.constant 0 : i32
    return %c0_i32, %c0_i32_0 : i32, i32
  }
  func.func @transform_7(%arg0: i32) -> (i32, i32, i32) {
    %c0_i32 = arith.constant 0 : i32
    %c0_i32_0 = arith.constant 0 : i32
    %c0_i32_1 = arith.constant 0 : i32
    return %arg0, %c0_i32, %c0_i32_0 : i32, i32, i32
  }
}

</mosaic_0001>

<llo_original>
// kernel: tpu_custom_call.1
$region0: #{tpu_custom_call.1}
  #allocation0 [shape = 'u32[]', space=smem, size = 0x4, offset = 0x4, fixed_abs, tag = 'smem constant byte address 0x4 - core index']
  #allocation1 [shape = 'u32[144,128]{1,0:T(1,128)}', space=vmem, size = 0x12000, scoped, tag = 'internal scratch']
  #allocation2 [shape = 'f32[1,1]{1,0:T(1,128)S(6)}', space=smem, size = 0x200, scoped, tag = 'scoped memory for tpu_custom_call.1']
  %s0 = inlined_call_operand.vmem [shape: f32[8,16], index: 0, kind: input, shape index: {}]
  %s1 = inlined_call_operand.vmem [shape: bf16[64,16], index: 1, kind: input, shape index: {}]
  %s2 = inlined_call_operand.vmem [shape: f32[64,1], index: 2, kind: input, shape index: {}]
  %s3 = inlined_call_operand.vmem [shape: bf16[64,64], index: 3, kind: input, shape index: {}]
  %s4 = inlined_call_operand.vmem [shape: f32[64,1], index: 4, kind: input, shape index: {}]
  %s5 = inlined_call_operand.vmem [shape: f32[64,1], index: 5, kind: input, shape index: {}]
  %s6 = inlined_call_operand.<no memory space> [shape: f32[1,1], index: 6, kind: input, shape index: {}]
  %s7 = inlined_call_operand.hbm [shape: f32[1,1,8], index: 7, kind: output, shape index: {}]
  %s8 = sld [smem:[#allocation0]]
  $region38: #{tpu_custom_call.1} parent=0
    _
  %s10 = ssub.s32 1, %s8
  %s11 = scalar_select 0, %s10, %s8
  %12 = sst [smem:[#allocation2]] %s6
  $region1: #{tpu_custom_call.1} parent=0
    #allocation3 [shape = 'u8[512]{0}', space=vmem, size = 0x400, scoped, tag = 'output window, operand 0, single buffered']
    #allocation4 [shape = 's32[1]{0}', space=sflag, size = 0x4, scoped, tag = 'scoped memory for tpu_custom_call.1']
    %13 = vsyncpa [#allocation4], 0
    // Predicated region
    $region2: #{tpu_custom_call.1} parent=1 // pred_check
      _
    $region3: #{tpu_custom_call.1} parent=1 // pred_check_branch
      %15 = sbr.rel (0) target = $region5
    $region4: #{tpu_custom_call.1} parent=1 // pred_region
      _
    $region5: #{tpu_custom_call.1} parent=1 // pred_fallthru
      _
    // Predicated region
    $region6: #{tpu_custom_call.1} parent=1 // pred_check
      _
    $region7: #{tpu_custom_call.1} parent=1 // pred_check_branch
      %17 = sbr.rel (0) target = $region9
    $region8: #{tpu_custom_call.1} parent=1 // pred_region
      _
    $region9: #{tpu_custom_call.1} parent=1 // pred_fallthru
      _
    // Predicated region
    $region10: #{tpu_custom_call.1} parent=1 // pred_check
      _
    $region11: #{tpu_custom_call.1} parent=1 // pred_check_branch
      %19 = sbr.rel (0) target = $region13
    $region12: #{tpu_custom_call.1} parent=1 // pred_region
      _
    $region13: #{tpu_custom_call.1} parent=1 // pred_fallthru
      _
    // Predicated region
    $region14: #{tpu_custom_call.1} parent=1 // pred_check
      _
    $region15: #{tpu_custom_call.1} parent=1 // pred_check_branch
      %21 = sbr.rel (0) target = $region17
    $region16: #{tpu_custom_call.1} parent=1 // pred_region
      _
    $region17: #{tpu_custom_call.1} parent=1 // pred_fallthru
      _
    // Predicated region
    $region18: #{tpu_custom_call.1} parent=1 // pred_check
      _
    $region19: #{tpu_custom_call.1} parent=1 // pred_check_branch
      %23 = sbr.rel (0) target = $region21
    $region20: #{tpu_custom_call.1} parent=1 // pred_region
      _
    $region21: #{tpu_custom_call.1} parent=1 // pred_fallthru
      _
    // Predicated region
    $region22: #{tpu_custom_call.1} parent=1 // pred_check
      _
    $region23: #{tpu_custom_call.1} parent=1 // pred_check_branch
      %25 = sbr.rel (0) target = $region25
    $region24: #{tpu_custom_call.1} parent=1 // pred_region
      _
    $region25: #{tpu_custom_call.1} parent=1 // pred_fallthru
      _
    // Predicated region
    $region26: #{tpu_custom_call.1} parent=1 // pred_check
      _
    $region27: #{tpu_custom_call.1} parent=1 // pred_check_branch
      %27 = sbr.rel (0) target = $region29
    $region28: #{tpu_custom_call.1} parent=1 // pred_region
      _
    $region29: #{tpu_custom_call.1} parent=1 // pred_fallthru
      _
    %v29 = vld [vmem:[%s1] sm:$0xf]
    %v30 = vld [vmem:[%s1 + $0x4] sm:$0xf]
    %v31 = vld [vmem:[%s1 + $0x8] sm:$0xf]
    %v32 = vld [vmem:[%s1 + $0xc] sm:$0xf]
    %v33 = vld [vmem:[%s1 + $0x10] sm:$0xf]
    %v34 = vld [vmem:[%s1 + $0x14] sm:$0xf]
    %v35 = vld [vmem:[%s1 + $0x18] sm:$0xf]
    %v36 = vld [vmem:[%s1 + $0x1c] sm:$0xf]
    %v37 = vld [vmem:[%s2] sm:$0xff]
    %v38 = vld [vmem:[%s2 + $0x8] sm:$0xff]
    %v39 = vld [vmem:[%s2 + $0x10] sm:$0xff]
    %v40 = vld [vmem:[%s2 + $0x18] sm:$0xff]
    %v41 = vld [vmem:[%s2 + $0x20] sm:$0xff]
    %v42 = vld [vmem:[%s2 + $0x28] sm:$0xff]
    %v43 = vld [vmem:[%s2 + $0x30] sm:$0xff]
    %v44 = vld [vmem:[%s2 + $0x38] sm:$0xff]
    %v45 = vld [vmem:[%s3] sm:$0xf]
    %v46 = vld [vmem:[%s3 + $0x4] sm:$0xf]
    %v47 = vld [vmem:[%s3 + $0x8] sm:$0xf]
    %v48 = vld [vmem:[%s3 + $0xc] sm:$0xf]
    %v49 = vld [vmem:[%s3 + $0x10] sm:$0xf]
    %v50 = vld [vmem:[%s3 + $0x14] sm:$0xf]
    %v51 = vld [vmem:[%s3 + $0x18] sm:$0xf]
    %v52 = vld [vmem:[%s3 + $0x1c] sm:$0xf]
    %v53 = vld [vmem:[%s4] sm:$0xff]
    %v54 = vld [vmem:[%s4 + $0x8] sm:$0xff]
    %v55 = vld [vmem:[%s4 + $0x10] sm:$0xff]
    %v56 = vld [vmem:[%s4 + $0x18] sm:$0xff]
    %v57 = vld [vmem:[%s4 + $0x20] sm:$0xff]
    %v58 = vld [vmem:[%s4 + $0x28] sm:$0xff]
    %v59 = vld [vmem:[%s4 + $0x30] sm:$0xff]
    %v60 = vld [vmem:[%s4 + $0x38] sm:$0xff]
    %v61 = vld [vmem:[%s5] sm:$0xff]
    %v62 = vld [vmem:[%s5 + $0x8] sm:$0xff]
    %v63 = vld [vmem:[%s5 + $0x10] sm:$0xff]
    %v64 = vld [vmem:[%s5 + $0x18] sm:$0xff]
    %v65 = vld [vmem:[%s5 + $0x20] sm:$0xff]
    %v66 = vld [vmem:[%s5 + $0x28] sm:$0xff]
    %v67 = vld [vmem:[%s5 + $0x30] sm:$0xff]
    %v68 = vld [vmem:[%s5 + $0x38] sm:$0xff]
    %s69 = sld [smem:[#allocation2]]
    %v70 = vld [vmem:[%s0] sm:$0xff]
    %v71 = vpack.c.bf16 %v70, %v70
    %73 = vset.pattern.permute.xlu0 0
    %74 = vperm.xlu0 %73, %v37
    %v75 = vpop.permute.xlu0 %74
    %78 = vset.pattern.permute.xlu0 0
    %79 = vperm.xlu0 %78, %v38
    %v80 = vpop.permute.xlu0 %79
    %83 = vset.pattern.permute.xlu0 0
    %84 = vperm.xlu0 %83, %v39
    %v85 = vpop.permute.xlu0 %84
    %88 = vset.pattern.permute.xlu0 0
    %89 = vperm.xlu0 %88, %v40
    %v90 = vpop.permute.xlu0 %89
    %93 = vset.pattern.permute.xlu0 0
    %94 = vperm.xlu0 %93, %v41
    %v95 = vpop.permute.xlu0 %94
    %98 = vset.pattern.permute.xlu0 0
    %99 = vperm.xlu0 %98, %v42
    %v100 = vpop.permute.xlu0 %99
    %103 = vset.pattern.permute.xlu0 0
    %104 = vperm.xlu0 %103, %v43
    %v105 = vpop.permute.xlu0 %104
    %108 = vset.pattern.permute.xlu0 0
    %109 = vperm.xlu0 %108, %v44
    %v110 = vpop.permute.xlu0 %109
    %v120 = vunpack.c.l.b16 %v29
    %v121 = vunpack.c.l.b16 %v30
    %v122 = vunpack.c.l.b16 %v31
    %v123 = vunpack.c.l.b16 %v32
    %v124 = vunpack.c.l.b16 %v33
    %v125 = vunpack.c.l.b16 %v34
    %v126 = vunpack.c.l.b16 %v35
    %v127 = vunpack.c.l.b16 %v36
    %v128 = vpack.c.b16 %v121, %v120
    %v129 = vpack.c.b16 %v123, %v122
    %v130 = vpack.c.b16 %v125, %v124
    %v131 = vpack.c.b16 %v127, %v126
    %vm132 = vcmask 130048
    %v134 = vsel %vm132, %v128, 0
    %v137 = vsel %vm132, %v129, 0
    %v140 = vsel %vm132, %v130, 0
    %v143 = vsel %vm132, %v131, 0
    %v146 = vsel %vm132, %v71, 0
    %148 = vmatprep.subr.bf16.mxu0 0
    %149 = vmatpush1.bf16.xpose.msra.mxu0 0
    %150 = vmatprep.subr.bf16.mxu0 0
    %151 = vmatpush1.bf16.xpose.msra.mxu0 0
    %152 = vmatprep.subr.bf16.mxu0 0
    %153 = vmatpush1.bf16.xpose.msra.mxu0 0
    %154 = vmatprep.subr.bf16.mxu0 0
    %155 = vmatpush1.bf16.xpose.msra.mxu0 0
    %156 = vmatprep.subr.bf16.mxu0 0
    %157 = vmatpush1.bf16.xpose.msra.mxu0 0
    %158 = vmatprep.subr.bf16.mxu0 0
    %159 = vmatpush1.bf16.xpose.msra.mxu0 0
    %160 = vmatprep.subr.bf16.mxu0 0
    %161 = vmatpush1.bf16.xpose.msra.mxu0 0
    %162 = vmatprep.subr.bf16.mxu0 0
    %163 = vmatpush1.bf16.xpose.msra.mxu0 %v146
    %164 = vmatprep.subr.bf16.mxu0 0
    %165 = vmatpush2.bf16.xpose.msra.mxu0 0
    %166 = vmatprep.subr.bf16.mxu0 0
    %167 = vmatpush2.bf16.xpose.msra.mxu0 0
    %168 = vmatprep.subr.bf16.mxu0 0
    %169 = vmatpush2.bf16.xpose.msra.mxu0 0
    %170 = vmatprep.subr.bf16.mxu0 0
    %171 = vmatpush2.bf16.xpose.msra.mxu0 0
    %172 = vmatprep.subr.bf16.mxu0 0
    %173 = vmatpush2.bf16.xpose.msra.mxu0 0
    %174 = vmatprep.subr.bf16.mxu0 0
    %175 = vmatpush2.bf16.xpose.msra.mxu0 0
    %176 = vmatprep.subr.bf16.mxu0 0
    %177 = vmatpush2.bf16.xpose.msra.mxu0 0
    %178 = vmatprep.subr.bf16.mxu0 0
    %179 = vmatpush2.bf16.xpose.msra.mxu0 0
    %180 = vmatprep.mubr.bf16.mxu0 0
    %181 = vmatmul.mubr.bf16.gmra.mxu0 %v134
    %v182 = vpop.f32.mrf.mxu0
    %v183 = vadd.f32 %v75, %v182
    %v184 = vpop.f32.mrf.mxu0
    %v185 = vpop.f32.mrf.mxu0
    %v186 = vadd.f32 %v80, %v185
    %v187 = vpop.f32.mrf.mxu0
    %188 = vmatprep.mubr.bf16.mxu0 0
    %189 = vmatmul.mubr.bf16.gmra.mxu0 %v137
    %v190 = vpop.f32.mrf.mxu0
    %v191 = vadd.f32 %v85, %v190
    %v192 = vpop.f32.mrf.mxu0
    %v193 = vpop.f32.mrf.mxu0
    %v194 = vadd.f32 %v90, %v193
    %v195 = vpop.f32.mrf.mxu0
    %196 = vmatprep.mubr.bf16.mxu0 0
    %197 = vmatmul.mubr.bf16.gmra.mxu0 %v140
    %v198 = vpop.f32.mrf.mxu0
    %v199 = vadd.f32 %v95, %v198
    %v200 = vpop.f32.mrf.mxu0
    %v201 = vpop.f32.mrf.mxu0
    %v202 = vadd.f32 %v100, %v201
    %v203 = vpop.f32.mrf.mxu0
    %204 = vmatprep.mubr.bf16.mxu0 0
    %205 = vmatmul.mubr.bf16.gmra.mxu0 %v143
    %v206 = vpop.f32.mrf.mxu0
    %v207 = vadd.f32 %v105, %v206
    %v208 = vpop.f32.mrf.mxu0
    %v209 = vpop.f32.mrf.mxu0
    %v210 = vadd.f32 %v110, %v209
    %v211 = vpop.f32.mrf.mxu0
    %212 = vdwg.mxu0
    %v213 = vmax.f32 %v183, 0.0
    %v214 = vmax.f32 %v186, 0.0
    %v215 = vmax.f32 %v191, 0.0
    %v216 = vmax.f32 %v194, 0.0
    %v217 = vmax.f32 %v199, 0.0
    %v218 = vmax.f32 %v202, 0.0
    %v219 = vmax.f32 %v207, 0.0
    %v220 = vmax.f32 %v210, 0.0
    %v221 = vpack.c.bf16 %v214, %v213
    %v222 = vpack.c.bf16 %v216, %v215
    %v223 = vpack.c.bf16 %v218, %v217
    %v224 = vpack.c.bf16 %v220, %v219
    %226 = vset.pattern.permute.xlu0 0
    %227 = vperm.xlu0 %226, %v53
    %v228 = vpop.permute.xlu0 %227
    %231 = vset.pattern.permute.xlu0 0
    %232 = vperm.xlu0 %231, %v54
    %v233 = vpop.permute.xlu0 %232
    %236 = vset.pattern.permute.xlu0 0
    %237 = vperm.xlu0 %236, %v55
    %v238 = vpop.permute.xlu0 %237
    %241 = vset.pattern.permute.xlu0 0
    %242 = vperm.xlu0 %241, %v56
    %v243 = vpop.permute.xlu0 %242
    %246 = vset.pattern.permute.xlu0 0
    %247 = vperm.xlu0 %246, %v57
    %v248 = vpop.permute.xlu0 %247
    %251 = vset.pattern.permute.xlu0 0
    %252 = vperm.xlu0 %251, %v58
    %v253 = vpop.permute.xlu0 %252
    %256 = vset.pattern.permute.xlu0 0
    %257 = vperm.xlu0 %256, %v59
    %v258 = vpop.permute.xlu0 %257
    %261 = vset.pattern.permute.xlu0 0
    %262 = vperm.xlu0 %261, %v60
    %v263 = vpop.permute.xlu0 %262
    %v273 = vunpack.c.l.b16 %v45
    %v274 = vunpack.c.l.b16 %v46
    %v275 = vunpack.c.l.b16 %v47
    %v276 = vunpack.c.l.b16 %v48
    %v277 = vunpack.c.l.b16 %v49
    %v278 = vunpack.c.l.b16 %v50
    %v279 = vunpack.c.l.b16 %v51
    %v280 = vunpack.c.l.b16 %v52
    %v281 = vpack.c.b16 %v274, %v273
    %v282 = vpack.c.b16 %v276, %v275
    %v283 = vpack.c.b16 %v278, %v277
    %v284 = vpack.c.b16 %v280, %v279
    %vm285 = vcmask 523264
    %v287 = vsel %vm285, %v281, 0
    %v290 = vsel %vm285, %v282, 0
    %v293 = vsel %vm285, %v283, 0
    %v296 = vsel %vm285, %v284, 0
    %298 = vmatprep.subr.bf16.mxu0 0
    %299 = vmatpush1.bf16.msra.mxu0 0
    %300 = vmatprep.subr.bf16.mxu0 0
    %301 = vmatpush1.bf16.msra.mxu0 0
    %302 = vmatprep.subr.bf16.mxu0 0
    %303 = vmatpush1.bf16.msra.mxu0 0
    %304 = vmatprep.subr.bf16.mxu0 0
    %305 = vmatpush1.bf16.msra.mxu0 0
    %306 = vmatprep.subr.bf16.mxu0 0
    %307 = vmatpush1.bf16.msra.mxu0 %v224
    %308 = vmatprep.subr.bf16.mxu0 0
    %309 = vmatpush1.bf16.msra.mxu0 %v223
    %310 = vmatprep.subr.bf16.mxu0 0
    %311 = vmatpush1.bf16.msra.mxu0 %v222
    %312 = vmatprep.subr.bf16.mxu0 0
    %313 = vmatpush1.bf16.msra.mxu0 %v221
    %314 = vmatprep.subr.bf16.mxu0 0
    %315 = vmatpush2.bf16.msra.mxu0 0
    %316 = vmatprep.subr.bf16.mxu0 0
    %317 = vmatpush2.bf16.msra.mxu0 0
    %318 = vmatprep.subr.bf16.mxu0 0
    %319 = vmatpush2.bf16.msra.mxu0 0
    %320 = vmatprep.subr.bf16.mxu0 0
    %321 = vmatpush2.bf16.msra.mxu0 0
    %322 = vmatprep.subr.bf16.mxu0 0
    %323 = vmatpush2.bf16.msra.mxu0 0
    %324 = vmatprep.subr.bf16.mxu0 0
    %325 = vmatpush2.bf16.msra.mxu0 0
    %326 = vmatprep.subr.bf16.mxu0 0
    %327 = vmatpush2.bf16.msra.mxu0 0
    %328 = vmatprep.subr.bf16.mxu0 0
    %329 = vmatpush2.bf16.msra.mxu0 0
    %330 = vmatprep.mubr.bf16.mxu0 0
    %331 = vmatmul.mubr.bf16.gmra.mxu0 %v287
    %v332 = vpop.f32.mrf.mxu0
    %v333 = vadd.f32 %v228, %v332
    %v334 = vpop.f32.mrf.mxu0
    %v335 = vpop.f32.mrf.mxu0
    %v336 = vadd.f32 %v233, %v335
    %v337 = vpop.f32.mrf.mxu0
    %338 = vmatprep.mubr.bf16.mxu0 0
    %339 = vmatmul.mubr.bf16.gmra.mxu0 %v290
    %v340 = vpop.f32.mrf.mxu0
    %v341 = vadd.f32 %v238, %v340
    %v342 = vpop.f32.mrf.mxu0
    %v343 = vpop.f32.mrf.mxu0
    %v344 = vadd.f32 %v243, %v343
    %v345 = vpop.f32.mrf.mxu0
    %346 = vmatprep.mubr.bf16.mxu0 0
    %347 = vmatmul.mubr.bf16.gmra.mxu0 %v293
    %v348 = vpop.f32.mrf.mxu0
    %v349 = vadd.f32 %v248, %v348
    %v350 = vpop.f32.mrf.mxu0
    %v351 = vpop.f32.mrf.mxu0
    %v352 = vadd.f32 %v253, %v351
    %v353 = vpop.f32.mrf.mxu0
    %354 = vmatprep.mubr.bf16.mxu0 0
    %355 = vmatmul.mubr.bf16.gmra.mxu0 %v296
    %v356 = vpop.f32.mrf.mxu0
    %v357 = vadd.f32 %v258, %v356
    %v358 = vpop.f32.mrf.mxu0
    %v359 = vpop.f32.mrf.mxu0
    %v360 = vadd.f32 %v263, %v359
    %v361 = vpop.f32.mrf.mxu0
    %362 = vdwg.mxu0
    %v363 = vmax.f32 %v333, 0.0
    %v364 = vmax.f32 %v336, 0.0
    %v365 = vmax.f32 %v341, 0.0
    %v366 = vmax.f32 %v344, 0.0
    %v367 = vmax.f32 %v349, 0.0
    %v368 = vmax.f32 %v352, 0.0
    %v369 = vmax.f32 %v357, 0.0
    %v370 = vmax.f32 %v360, 0.0
    %372 = vset.pattern.permute.xlu0 0
    %373 = vperm.xlu0 %372, %v61
    %v374 = vpop.permute.xlu0 %373
    %377 = vset.pattern.permute.xlu0 0
    %378 = vperm.xlu0 %377, %v62
    %v379 = vpop.permute.xlu0 %378
    %382 = vset.pattern.permute.xlu0 0
    %383 = vperm.xlu0 %382, %v63
    %v384 = vpop.permute.xlu0 %383
    %387 = vset.pattern.permute.xlu0 0
    %388 = vperm.xlu0 %387, %v64
    %v389 = vpop.permute.xlu0 %388
    %392 = vset.pattern.permute.xlu0 0
    %393 = vperm.xlu0 %392, %v65
    %v394 = vpop.permute.xlu0 %393
    %397 = vset.pattern.permute.xlu0 0
    %398 = vperm.xlu0 %397, %v66
    %v399 = vpop.permute.xlu0 %398
    %402 = vset.pattern.permute.xlu0 0
    %403 = vperm.xlu0 %402, %v67
    %v404 = vpop.permute.xlu0 %403
    %407 = vset.pattern.permute.xlu0 0
    %408 = vperm.xlu0 %407, %v68
    %v409 = vpop.permute.xlu0 %408
    %v411 = vmul.f32 %v363, %v374
    %v412 = vmul.f32 %v364, %v379
    %v413 = vmul.f32 %v365, %v384
    %v414 = vmul.f32 %v366, %v389
    %v415 = vmul.f32 %v367, %v394
    %v416 = vmul.f32 %v368, %v399
    %v417 = vmul.f32 %v369, %v404
    %v418 = vmul.f32 %v370, %v409
    %vm419 = vcmask 64512
    %v420 = vsel %vm419, %v411, 0.0
    %v421 = vsel %vm419, %v412, 0.0
    %v422 = vadd.f32 %v420, %v421
    %v423 = vsel %vm419, %v413, 0.0
    %v424 = vadd.f32 %v422, %v423
    %v425 = vsel %vm419, %v414, 0.0
    %v426 = vadd.f32 %v424, %v425
    %v427 = vsel %vm419, %v415, 0.0
    %v428 = vadd.f32 %v426, %v427
    %v429 = vsel %vm419, %v416, 0.0
    %v430 = vadd.f32 %v428, %v429
    %v431 = vsel %vm419, %v417, 0.0
    %v432 = vadd.f32 %v430, %v431
    %v433 = vsel %vm419, %v418, 0.0
    %v434 = vadd.f32 %v432, %v433
    %v435 = vrot.slane %v434, 4
    %v436 = vadd.f32 %v434, %v435
    %v437 = vrot.slane %v436, 2
    %v438 = vadd.f32 %v436, %v437
    %v439 = vrot.slane %v438, 1
    %v440 = vadd.f32 %v438, %v439
    %v441 = vstv %s69
    %v442 = vadd.f32 %v440, %v441
    %vm443 = vcmask 57344
    %444 = vst.msk [vmem:[#allocation3] sm:$0x1] %vm443, %v442
    // Predicated region
    $region30: #{tpu_custom_call.1} parent=1 // pred_check
      _
    $region31: #{tpu_custom_call.1} parent=1 // pred_check_branch
      %446 = sbr.rel (0) target = $region33
    $region32: #{tpu_custom_call.1} parent=1 // pred_region
      %s448 = ssub.s32 16, 16
      %449 = vsyncadd [#allocation4], %s448
      %s451 = sshll.u32 [#allocation3], 4
      %s452 = int_to_ptr.vmem [resolvable:$true] %s451
      %454 = dma.vmem_to_hbm [thread:$0]  %s452, 16, %s7, [#allocation4]
    $region33: #{tpu_custom_call.1} parent=1 // pred_fallthru
      _
    // Predicated region
    $region34: #{tpu_custom_call.1} parent=1 // pred_check
      _
    $region35: #{tpu_custom_call.1} parent=1 // pred_check_branch
      %456 = sbr.rel (0) target = $region37
    $region36: #{tpu_custom_call.1} parent=1 // pred_region
      %457 = dma.done [#allocation4], 16
    $region37: #{tpu_custom_call.1} parent=1 // pred_fallthru
      _
    %458 = vsyncpa [#allocation4], 1

</llo_original>
